<compile_context>
chip_gen: v5e
topology: v5e:2x2
jax: 0.10.0
libtpu: 0.0.40
codegen_flags: <defaults>
</compile_context>

<pallas_src>
import functools

import jax
import jax.numpy as jnp
from jax import lax
from jax.experimental import pallas as pl
from jax.experimental.pallas import tpu as pltpu


def _sdpa_sparse_kernel(q_ref, k_ref, v_ref, out_ref, attn_ref, *,
                        inv_temperature, topk):
    # q tile: (TILE_Q, D); k/v: (Lk, D)/(Lk, Dv), resident across q tiles.
    q = q_ref[0] * jnp.asarray(inv_temperature, q_ref.dtype)  # fold 1/T into q
    k = k_ref[0]
    v = v_ref[0]
    tile_q = q.shape[0]
    Lk = k.shape[0]

    # scores = (q / T) @ k^T : contract D on both operands (no k transpose),
    # MXU runs in the input dtype with f32 accumulation.
    scores = lax.dot_general(q, k, (((1,), (1,)), ((), ())),
                             preferred_element_type=jnp.float32)

    # softmax over the key axis (dim=2 in the torch module).  The divide is a
    # (tile_q, 1) column -> exact division is essentially free and keeps the
    # result bit-close to the reference (approx reciprocal was NOT enough).
    m = jnp.max(scores, axis=-1, keepdims=True)
    e = jnp.exp(scores - m)
    attn = e * (1.0 / jnp.sum(e, axis=-1, keepdims=True))

    # Sparse_attention(top_k=topk): internally uses top_k + 1; static no-op
    # when Lk <= top_k + 1.
    eps = jnp.float32(1e-7)  # 10e-8 in the torch code
    k_sel = topk + 1
    if Lk > k_sel:
        # attn is in [0, 1]; a finite sentinel keeps rows with many exact ties
        # (e.g. zero-padded q rows) NaN-free.
        sentinel = jnp.float32(-1.0)

        def body(_, carry):
            work, _kth = carry
            cur = jnp.max(work, axis=-1, keepdims=True)   # one XLU reduce / pass
            # Mask every element equal to the current max.  Matches the
            # reference's sort-based kth value except on exact float
            # duplicates inside a softmax row (effectively impossible for
            # un-masked, non-degenerate inputs).
            work = jnp.where(work == cur, sentinel, work)
            return work, cur

        _, kth = lax.fori_loop(
            0, k_sel, body,
            (attn, jnp.zeros((tile_q, 1), jnp.float32)),
            unroll=True if k_sel <= 8 else 4)

        w = jnp.maximum(attn - (kth + eps), 0.0)          # clamp(min=0)
        inv_s = 1.0 / (jnp.sum(w, axis=-1, keepdims=True) + eps)  # exact
        attn = w * inv_s

    out = jnp.dot(attn.astype(v.dtype), v, preferred_element_type=jnp.float32)
    out_ref[0] = out.astype(out_ref.dtype)
    attn_ref[0] = attn.astype(attn_ref.dtype)


def _round_up(x, m):
    return ((x + m - 1) // m) * m


def _pick_tile_q(lq, lk):
    # Keep the f32 (tile_q, Lk) temporaries bounded: cap at 128 query rows for
    # long key contexts, 256 otherwise.  Round small Lq up to a sublane
    # multiple instead of the old "fall back to full Lq" behavior.
    cap = 256 if lk <= 2048 else 128
    return min(cap, _round_up(max(lq, 1), 8))


def _vmem_limit_bytes(tile_q, lk, d, dv, itemsize):
    # Rough budget: double-buffered q/out/attn tiles + resident (double
    # buffered) k/v + f32 temporaries headroom.
    est = (2 * itemsize * (tile_q * (d + dv + lk) + lk * (d + dv))
           + 8 * tile_q * lk * 4
           + 4 * tile_q * (d + dv) * 4)
    try:
        phys = int(pltpu.get_tpu_info().vmem_capacity_bytes)
    except Exception:
        phys = 64 << 20   # conservative (v7x-sized) fallback
    hi = (phys * 3) // 4  # leave headroom for Mosaic internal scratch
    return int(min(max(int(est * 1.5), 16 << 20), hi))


def scaled_dot_product_attention(q, k, v, *, temperature, topk,
                                 grad_sparse=False, mask=None):
    """Forward pass of ScaledDotProductAttention. Returns (output, attn, extra_loss)."""
    # TODO(synk): optional `mask` (masked_fill with -inf) not wired; module is
    # exercised with mask=None here.
    assert mask is None
    # grad_sparse only changes the backward pass in the torch module; the
    # forward sparsification here is the Sparse_attention path.
    del grad_sparse

    B, Lq, D = q.shape
    _, Lk, Dv = v.shape

    tile_q = _pick_tile_q(Lq, Lk)
    Lq_pad = _round_up(Lq, tile_q)
    if Lq_pad != Lq:
        q = jnp.pad(q, ((0, 0), (0, Lq_pad - Lq), (0, 0)))
    n_q = Lq_pad // tile_q

    kernel = functools.partial(
        _sdpa_sparse_kernel,
        inv_temperature=1.0 / float(temperature),
        topk=int(topk))

    itemsize = int(jnp.dtype(q.dtype).itemsize)
    vmem_limit = _vmem_limit_bytes(tile_q, Lk, D, Dv, itemsize)

    cost = pl.CostEstimate(
        flops=2 * B * Lq * Lk * (D + Dv),
        transcendentals=B * Lq * Lk,
        bytes_accessed=itemsize * B * (Lq * D + Lk * D + Lk * Dv
                                       + Lq * Dv + Lq * Lk),
    )

    out, attn = pl.pallas_call(
        kernel,
        out_shape=(
            jax.ShapeDtypeStruct((B, Lq_pad, Dv), q.dtype),
            jax.ShapeDtypeStruct((B, Lq_pad, Lk), q.dtype),
        ),
        grid=(B, n_q),
        in_specs=[
            pl.BlockSpec((1, tile_q, D), lambda b, i: (b, i, 0)),
            pl.BlockSpec((1, Lk, D), lambda b, i: (b, 0, 0)),   # resident across q tiles
            pl.BlockSpec((1, Lk, Dv), lambda b, i: (b, 0, 0)),  # resident across q tiles
        ],
        out_specs=(
            pl.BlockSpec((1, tile_q, Dv), lambda b, i: (b, i, 0)),
            pl.BlockSpec((1, tile_q, Lk), lambda b, i: (b, i, 0)),
        ),
        compiler_params=pltpu.CompilerParams(
            dimension_semantics=("parallel", "parallel"),
            vmem_limit_bytes=vmem_limit),
        cost_estimate=cost,
    )(q, k, v)

    if Lq_pad != Lq:
        out = out[:, :Lq]
        attn = attn[:, :Lq]

    extra_loss = 0.0
    return out, attn, extra_loss


def _reference(q, k, v, temperature, topk):
    """Pure-JAX reference mirroring the torch module (mask=None, grad_sparse=False)."""
    attn = jnp.einsum("bqd,bkd->bqk", q, k) / temperature
    attn = jax.nn.softmax(attn, axis=-1)
    eps = 1e-7
    k_sel = topk + 1
    Lk = attn.shape[-1]
    if Lk > k_sel:
        kth = jnp.sort(attn, axis=-1)[..., Lk - k_sel][..., None]
        w = jnp.maximum(attn - (kth + eps), 0.0)
        attn = w / (jnp.sum(w, axis=-1, keepdims=True) + eps)
    out = jnp.einsum("bqk,bkd->bqd", attn, v)
    return out, attn


if __name__ == "__main__":
    key = jax.random.PRNGKey(0)
    kq, kk, kv = jax.random.split(key, 3)

    B, Lq, Lk, D, Dv = 2, 8, 8, 32, 32
    temperature = float(D) ** 0.5
    topk = 3

    q = jax.random.normal(kq, (B, Lq, D), jnp.float32)
    k = jax.random.normal(kk, (B, Lk, D), jnp.float32)
    v = jax.random.normal(kv, (B, Lk, Dv), jnp.float32)

    out, attn, extra_loss = scaled_dot_product_attention(
        q, k, v, temperature=temperature, topk=topk
    )
    jax.block_until_ready((out, attn))

    out_ref, attn_ref = _reference(q, k, v, temperature, topk)
    assert jnp.allclose(attn, attn_ref, atol=1e-4, rtol=1e-4), "attn mismatch"
    assert jnp.allclose(out, out_ref, atol=1e-4, rtol=1e-4), "output mismatch"
    assert extra_loss == 0.0

    print("KERNEL_OK")
</pallas_src>

<mosaic_0001>
module attributes {stable_mosaic.version = 11 : i64} {
  func.func @_sdpa_sparse_kernel(%arg0: i32, %arg1: i32, %arg2: memref<1x8x32xf32, #tpu.memory_space<vmem>>, %arg3: memref<1x8x32xf32, #tpu.memory_space<vmem>>, %arg4: memref<1x8x32xf32, #tpu.memory_space<vmem>>, %arg5: memref<1x8x32xf32, #tpu.memory_space<vmem>>, %arg6: memref<1x8x8xf32, #tpu.memory_space<vmem>>) attributes {dimension_semantics = [#tpu.dimension_semantics<parallel>, #tpu.dimension_semantics<parallel>], iteration_bounds = array<i64: 2, 1>, scalar_prefetch = 0 : i64, scratch_operands = 0 : i64, tpu.core_type = #tpu.core_type<tc>, window_params = [{transform_indices = @transform_0, window_bounds = array<i64: 1, 8, 32>}, {transform_indices = @transform_1, window_bounds = array<i64: 1, 8, 32>}, {transform_indices = @transform_2, window_bounds = array<i64: 1, 8, 32>}, {transform_indices = @transform_3, window_bounds = array<i64: 1, 8, 32>}, {transform_indices = @transform_4, window_bounds = array<i64: 1, 8, 8>}]} {
    %c0 = arith.constant 0 : index
    %c0_0 = arith.constant 0 : index
    %c0_1 = arith.constant 0 : index
    %0 = vector.load %arg2[%c0, %c0_0, %c0_1] : memref<1x8x32xf32, #tpu.memory_space<vmem>>, vector<1x8x32xf32>
    %1 = vector.shape_cast %0 : vector<1x8x32xf32> to vector<8x32xf32>
    %cst = arith.constant 0.176776692 : f32
    %2 = vector.broadcast %cst : f32 to vector<8x32xf32>
    %3 = arith.mulf %1, %2 : vector<8x32xf32>
    %c0_2 = arith.constant 0 : index
    %c0_3 = arith.constant 0 : index
    %c0_4 = arith.constant 0 : index
    %4 = vector.load %arg3[%c0_2, %c0_3, %c0_4] : memref<1x8x32xf32, #tpu.memory_space<vmem>>, vector<1x8x32xf32>
    %5 = vector.shape_cast %4 : vector<1x8x32xf32> to vector<8x32xf32>
    %c0_5 = arith.constant 0 : index
    %c0_6 = arith.constant 0 : index
    %c0_7 = arith.constant 0 : index
    %6 = vector.load %arg4[%c0_5, %c0_6, %c0_7] : memref<1x8x32xf32, #tpu.memory_space<vmem>>, vector<1x8x32xf32>
    %7 = vector.shape_cast %6 : vector<1x8x32xf32> to vector<8x32xf32>
    %cst_8 = arith.constant dense<0.000000e+00> : vector<8x8xf32>
    %8 = tpu.matmul %3, %5, %cst_8 {dimension_numbers = #tpu.dot_dimension_numbers<[1], [1], [0], [0], [0, 0, 1, 0], [], []>} : vector<8x32xf32>, vector<8x32xf32>, vector<8x8xf32> -> vector<8x8xf32>
    %cst_9 = arith.constant dense<0xFF800000> : vector<8xf32>
    %9 = vector.multi_reduction <maximumf>, %8, %cst_9 [1] : vector<8x8xf32> to vector<8xf32>
    %10 = vector.shape_cast %9 : vector<8xf32> to vector<8x1xf32>
    %11 = vector.broadcast %10 : vector<8x1xf32> to vector<8x8xf32>
    %12 = arith.subf %8, %11 : vector<8x8xf32>
    %13 = math.exp %12 : vector<8x8xf32>
    %cst_10 = arith.constant dense<0.000000e+00> : vector<8xf32>
    %14 = vector.multi_reduction <add>, %13, %cst_10 [1] : vector<8x8xf32> to vector<8xf32>
    %15 = vector.shape_cast %14 : vector<8xf32> to vector<8x1xf32>
    %cst_11 = arith.constant 1.000000e+00 : f32
    %16 = vector.broadcast %cst_11 : f32 to vector<8x1xf32>
    %17 = arith.divf %16, %15 : vector<8x1xf32>
    %18 = vector.broadcast %17 : vector<8x1xf32> to vector<8x8xf32>
    %19 = arith.mulf %13, %18 : vector<8x8xf32>
    %cst_12 = arith.constant 0.000000e+00 : f32
    %20 = vector.broadcast %cst_12 : f32 to vector<8x1xf32>
    %cst_13 = arith.constant -1.000000e+00 : f32
    %c0_i32 = arith.constant 0 : i32
    %cst_14 = arith.constant dense<0xFF800000> : vector<8xf32>
    %21 = vector.multi_reduction <maximumf>, %19, %cst_14 [1] : vector<8x8xf32> to vector<8xf32>
    %22 = vector.shape_cast %21 : vector<8xf32> to vector<8x1xf32>
    %23 = vector.broadcast %22 : vector<8x1xf32> to vector<8x8xf32>
    %24 = arith.cmpf oeq, %19, %23 : vector<8x8xf32>
    %25 = vector.broadcast %cst_13 : f32 to vector<8x8xf32>
    %26 = arith.select %24, %25, %19 : vector<8x8xi1>, vector<8x8xf32>
    %c1_i32 = arith.constant 1 : i32
    %cst_15 = arith.constant dense<0xFF800000> : vector<8xf32>
    %27 = vector.multi_reduction <maximumf>, %26, %cst_15 [1] : vector<8x8xf32> to vector<8xf32>
    %28 = vector.shape_cast %27 : vector<8xf32> to vector<8x1xf32>
    %29 = vector.broadcast %28 : vector<8x1xf32> to vector<8x8xf32>
    %30 = arith.cmpf oeq, %26, %29 : vector<8x8xf32>
    %31 = vector.broadcast %cst_13 : f32 to vector<8x8xf32>
    %32 = arith.select %30, %31, %26 : vector<8x8xi1>, vector<8x8xf32>
    %c2_i32 = arith.constant 2 : i32
    %cst_16 = arith.constant dense<0xFF800000> : vector<8xf32>
    %33 = vector.multi_reduction <maximumf>, %32, %cst_16 [1] : vector<8x8xf32> to vector<8xf32>
    %34 = vector.shape_cast %33 : vector<8xf32> to vector<8x1xf32>
    %35 = vector.broadcast %34 : vector<8x1xf32> to vector<8x8xf32>
    %36 = arith.cmpf oeq, %32, %35 : vector<8x8xf32>
    %37 = vector.broadcast %cst_13 : f32 to vector<8x8xf32>
    %38 = arith.select %36, %37, %32 : vector<8x8xi1>, vector<8x8xf32>
    %c3_i32 = arith.constant 3 : i32
    %cst_17 = arith.constant dense<0xFF800000> : vector<8xf32>
    %39 = vector.multi_reduction <maximumf>, %38, %cst_17 [1] : vector<8x8xf32> to vector<8xf32>
    %40 = vector.shape_cast %39 : vector<8xf32> to vector<8x1xf32>
    %41 = vector.broadcast %40 : vector<8x1xf32> to vector<8x8xf32>
    %42 = arith.cmpf oeq, %38, %41 : vector<8x8xf32>
    %43 = vector.broadcast %cst_13 : f32 to vector<8x8xf32>
    %44 = arith.select %42, %43, %38 : vector<8x8xi1>, vector<8x8xf32>
    %cst_18 = arith.constant 1.000000e-07 : f32
    %45 = vector.broadcast %cst_18 : f32 to vector<8x1xf32>
    %46 = arith.addf %40, %45 : vector<8x1xf32>
    %47 = vector.broadcast %46 : vector<8x1xf32> to vector<8x8xf32>
    %48 = arith.subf %19, %47 : vector<8x8xf32>
    %cst_19 = arith.constant 0.000000e+00 : f32
    %49 = vector.broadcast %cst_19 : f32 to vector<8x8xf32>
    %50 = arith.maximumf %48, %49 : vector<8x8xf32>
    %cst_20 = arith.constant dense<0.000000e+00> : vector<8xf32>
    %51 = vector.multi_reduction <add>, %50, %cst_20 [1] : vector<8x8xf32> to vector<8xf32>
    %52 = vector.shape_cast %51 : vector<8xf32> to vector<8x1xf32>
    %cst_21 = arith.constant 1.000000e-07 : f32
    %53 = vector.broadcast %cst_21 : f32 to vector<8x1xf32>
    %54 = arith.addf %52, %53 : vector<8x1xf32>
    %cst_22 = arith.constant 1.000000e+00 : f32
    %55 = vector.broadcast %cst_22 : f32 to vector<8x1xf32>
    %56 = arith.divf %55, %54 : vector<8x1xf32>
    %57 = vector.broadcast %56 : vector<8x1xf32> to vector<8x8xf32>
    %58 = arith.mulf %50, %57 : vector<8x8xf32>
    %cst_23 = arith.constant dense<0.000000e+00> : vector<8x32xf32>
    %59 = tpu.matmul %58, %7, %cst_23 {dimension_numbers = #tpu.dot_dimension_numbers<[1], [0], [0], [1], [0, 0, 1, 1], [], []>} : vector<8x8xf32>, vector<8x32xf32>, vector<8x32xf32> -> vector<8x32xf32>
    %c0_24 = arith.constant 0 : index
    %c0_25 = arith.constant 0 : index
    %c0_26 = arith.constant 0 : index
    %60 = vector.load %arg5[%c0_24, %c0_25, %c0_26] : memref<1x8x32xf32, #tpu.memory_space<vmem>>, vector<1x8x32xf32>
    %61 = vector.shape_cast %60 : vector<1x8x32xf32> to vector<8x32xf32>
    %62 = vector.shape_cast %59 : vector<8x32xf32> to vector<1x8x32xf32>
    tpu.vector_store %arg5[%c0_24, %c0_25, %c0_26], %62 {strides = array<i32>} : memref<1x8x32xf32, #tpu.memory_space<vmem>>, vector<1x8x32xf32>,
    %c0_27 = arith.constant 0 : index
    %c0_28 = arith.constant 0 : index
    %c0_29 = arith.constant 0 : index
    %63 = vector.load %arg6[%c0_27, %c0_28, %c0_29] : memref<1x8x8xf32, #tpu.memory_space<vmem>>, vector<1x8x8xf32>
    %64 = vector.shape_cast %63 : vector<1x8x8xf32> to vector<8x8xf32>
    %65 = vector.shape_cast %58 : vector<8x8xf32> to vector<1x8x8xf32>
    tpu.vector_store %arg6[%c0_27, %c0_28, %c0_29], %65 {strides = array<i32>} : memref<1x8x8xf32, #tpu.memory_space<vmem>>, vector<1x8x8xf32>,
    return
  }
  func.func @transform_0(%arg0: i32, %arg1: i32) -> (i32, i32, i32) {
    %c0_i32 = arith.constant 0 : i32
    %c0_i32_0 = arith.constant 0 : i32
    return %arg0, %arg1, %c0_i32 : i32, i32, i32
  }
  func.func @transform_1(%arg0: i32, %arg1: i32) -> (i32, i32, i32) {
    %c0_i32 = arith.constant 0 : i32
    %c0_i32_0 = arith.constant 0 : i32
    %c0_i32_1 = arith.constant 0 : i32
    return %arg0, %c0_i32, %c0_i32_0 : i32, i32, i32
  }
  func.func @transform_2(%arg0: i32, %arg1: i32) -> (i32, i32, i32) {
    %c0_i32 = arith.constant 0 : i32
    %c0_i32_0 = arith.constant 0 : i32
    %c0_i32_1 = arith.constant 0 : i32
    return %arg0, %c0_i32, %c0_i32_0 : i32, i32, i32
  }
  func.func @transform_3(%arg0: i32, %arg1: i32) -> (i32, i32, i32) {
    %c0_i32 = arith.constant 0 : i32
    %c0_i32_0 = arith.constant 0 : i32
    return %arg0, %arg1, %c0_i32 : i32, i32, i32
  }
  func.func @transform_4(%arg0: i32, %arg1: i32) -> (i32, i32, i32) {
    %c0_i32 = arith.constant 0 : i32
    %c0_i32_0 = arith.constant 0 : i32
    return %arg0, %arg1, %c0_i32 : i32, i32, i32
  }
}

</mosaic_0001>

<llo_original>
// kernel: tpu_custom_call.1
$region0: #{tpu_custom_call.1}
  #allocation0 [shape = 'u32[]', space=smem, size = 0x4, offset = 0x4, fixed_abs, tag = 'smem constant byte address 0x4 - core index']
  #allocation1 [shape = 'u32[72,128]{1,0:T(1,128)}', space=vmem, size = 0x9000, scoped, tag = 'internal scratch']
  %s0 = inlined_call_operand.hbm [shape: f32[2,8,32], index: 0, kind: input, shape index: {}]
  %s1 = inlined_call_operand.hbm [shape: f32[2,8,32], index: 1, kind: input, shape index: {}]
  %s2 = inlined_call_operand.hbm [shape: f32[2,8,32], index: 2, kind: input, shape index: {}]
  %s3 = inlined_call_operand.hbm [shape: f32[2,8,32], index: 3, kind: output, shape index: {0}]
  %s4 = inlined_call_operand.hbm [shape: f32[2,8,8], index: 4, kind: output, shape index: {1}]
  %5 = xla_tuple %s3, %s4
  %s6 = sld [smem:[#allocation0]]
  $region65: #{tpu_custom_call.1} parent=0
    _
  %s8 = ssub.s32 1, %s6
  %s9 = scalar_select 0, %s8, %s6
  $region1: #{tpu_custom_call.1} parent=0
    #allocation2 [shape = 'u8[8192]{0}', space=vmem, size = 0x2000, scoped, tag = 'input window, operand 0']
    #allocation3 [shape = 's32[2]{0}', space=sflag, size = 0x8, scoped, tag = 'scoped memory for tpu_custom_call.1']
    #allocation4 [shape = 's32[2]{0}', space=sflag, size = 0x8, scoped, tag = 'scoped memory for tpu_custom_call.1']
    #allocation5 [shape = 'u8[8192]{0}', space=vmem, size = 0x2000, scoped, tag = 'input window, operand 1']
    #allocation6 [shape = 's32[2]{0}', space=sflag, size = 0x8, scoped, tag = 'scoped memory for tpu_custom_call.1']
    #allocation7 [shape = 'u8[8192]{0}', space=vmem, size = 0x2000, scoped, tag = 'input window, operand 2']
    #allocation8 [shape = 'u8[8192]{0}', space=vmem, size = 0x2000, scoped, tag = 'output window, operand 0']
    #allocation9 [shape = 'u8[8192]{0}', space=vmem, size = 0x2000, scoped, tag = 'output window, operand 1']
    #allocation10 [shape = 's32[2]{0}', space=sflag, size = 0x8, scoped, tag = 'scoped memory for tpu_custom_call.1']
    %10 = vsyncpa [#allocation3], 0
    %s11 = scalar_lea.sflag [#allocation3], 1
    %12 = vsyncpa %s11, 0
    %13 = vsyncpa [#allocation6], 0
    %s14 = scalar_lea.sflag [#allocation6], 1
    %15 = vsyncpa %s14, 0
    %16 = vsyncpa [#allocation4], 0
    %s17 = scalar_lea.sflag [#allocation4], 1
    %18 = vsyncpa %s17, 0
    %19 = vsyncpa [#allocation10], 0
    %s20 = scalar_lea.sflag [#allocation10], 1
    %21 = vsyncpa %s20, 0
    loop: start=0, step=1, limit=4
    $region2: #{tpu_custom_call.1} parent=1 // loop_pre_header
      _
    $region3: #{tpu_custom_call.1} parent=1 // loop_header
      %s23 = sphi 0, %s27
      %p24 = scmp.ge.s32.totalorder %s23, 4
      %s30 = sphi 0, %s42
      %s31 = sphi 0, %s38
      %s32 = sphi 0, %s30
      %s33 = sphi 0, %s31
      %s34 = sphi 0, %s32
      %s35 = sphi 0, %s33
      %s47 = sphi 0, %s49
      %s50 = sphi 0, %s47
      %s51 = sphi 0, %s50
      %s67 = sphi 0, %s51
      %s73 = sphi 0, %s75
      %s76 = sphi 0, %s73
      %s77 = sphi 0, %s76
      %s93 = sphi 0, %s77
      %s99 = sphi 0, %s101
      %s102 = sphi 0, %s99
      %s103 = sphi 0, %s102
      %s119 = sphi 0, %s103
      %s127 = sphi 0, %s129
      %s130 = sphi 0, %s127
      %s131 = sphi 0, %s130
      %s147 = sphi 0, %s131
      %s155 = sphi 0, %s157
      %s158 = sphi 0, %s155
      %s159 = sphi 0, %s158
      %s175 = sphi 0, %s159
    $region4: #{tpu_custom_call.1} parent=1 // loop_header_branch
      %26 = sbr.rel (%p24) target = $region8
    $region5: #{tpu_custom_call.1} parent=1 // loop_body
      %s28 = ssub.s32 %s23, 1
      %s29 = ssub.s32 %s23, 2
      %s36 = sadd.s32 1, %s31
      %p37 = scmp.ge.s32.totalorder %s36, 1
      %s38 = scalar_select %p37, 0, %s36
      %s39 = sadd.s32 1, %s30
      %s40 = scalar_select %p37, %s39, %s30
      %p41 = scmp.ge.s32.totalorder %s40, 2
      %s42 = scalar_select %p41, 0, %s40
      %s43 = ssub.s32 %s30, %s42
      %s44 = ssub.s32 %s31, %s38
      %s45 = sor.u32 %s43, %s44
      %p46 = scmp.eq.s32.totalorder %s45, 0
      %s48 = sadd.s32 %s47, 1
      %s49 = scalar_select %p46, %s47, %s48
      %p52 = pneg %p46
      %p53 = scmp.eq.s32.totalorder %s23, 1
      %p54 = por %p52, %p53
      %p55 = scmp.ne.s32.totalorder %s47, %s50
      %p56 = scmp.eq.s32.totalorder %s23, 0
      %p57 = por %p55, %p56
      %p58 = scmp.ne.s32.totalorder %s47, %s50
      %p59 = scmp.eq.s32.totalorder %s28, 1
      %p60 = por %p58, %p59
      %p61 = scmp.ne.s32.totalorder %s50, %s51
      %p62 = scmp.eq.s32.totalorder %s28, 0
      %p63 = por %p61, %p62
      %p64 = scmp.ne.s32.totalorder %s50, %s51
      %p65 = scmp.eq.s32.totalorder %s29, 1
      %p66 = por %p64, %p65
      %p68 = scmp.ne.s32.totalorder %s51, %s67
      %p69 = scmp.eq.s32.totalorder %s29, 0
      %p70 = por %p68, %p69
      %s71 = ssub.s32 %s30, %s42
      %p72 = scmp.eq.s32.totalorder %s71, 0
      %s74 = sadd.s32 %s73, 1
      %s75 = scalar_select %p72, %s73, %s74
      %p78 = pneg %p72
      %p79 = scmp.eq.s32.totalorder %s23, 1
      %p80 = por %p78, %p79
      %p81 = scmp.ne.s32.totalorder %s73, %s76
      %p82 = scmp.eq.s32.totalorder %s23, 0
      %p83 = por %p81, %p82
      %p84 = scmp.ne.s32.totalorder %s73, %s76
      %p85 = scmp.eq.s32.totalorder %s28, 1
      %p86 = por %p84, %p85
      %p87 = scmp.ne.s32.totalorder %s76, %s77
      %p88 = scmp.eq.s32.totalorder %s28, 0
      %p89 = por %p87, %p88
      %p90 = scmp.ne.s32.totalorder %s76, %s77
      %p91 = scmp.eq.s32.totalorder %s29, 1
      %p92 = por %p90, %p91
      %p94 = scmp.ne.s32.totalorder %s77, %s93
      %p95 = scmp.eq.s32.totalorder %s29, 0
      %p96 = por %p94, %p95
      %s97 = ssub.s32 %s30, %s42
      %p98 = scmp.eq.s32.totalorder %s97, 0
      %s100 = sadd.s32 %s99, 1
      %s101 = scalar_select %p98, %s99, %s100
      %p104 = pneg %p98
      %p105 = scmp.eq.s32.totalorder %s23, 1
      %p106 = por %p104, %p105
      %p107 = scmp.ne.s32.totalorder %s99, %s102
      %p108 = scmp.eq.s32.totalorder %s23, 0
      %p109 = por %p107, %p108
      %p110 = scmp.ne.s32.totalorder %s99, %s102
      %p111 = scmp.eq.s32.totalorder %s28, 1
      %p112 = por %p110, %p111
      %p113 = scmp.ne.s32.totalorder %s102, %s103
      %p114 = scmp.eq.s32.totalorder %s28, 0
      %p115 = por %p113, %p114
      %p116 = scmp.ne.s32.totalorder %s102, %s103
      %p117 = scmp.eq.s32.totalorder %s29, 1
      %p118 = por %p116, %p117
      %p120 = scmp.ne.s32.totalorder %s103, %s119
      %p121 = scmp.eq.s32.totalorder %s29, 0
      %p122 = por %p120, %p121
      %s123 = ssub.s32 %s30, %s42
      %s124 = ssub.s32 %s31, %s38
      %s125 = sor.u32 %s123, %s124
      %p126 = scmp.eq.s32.totalorder %s125, 0
      %s128 = sadd.s32 %s127, 1
      %s129 = scalar_select %p126, %s127, %s128
      %p132 = pneg %p126
      %p133 = scmp.eq.s32.totalorder %s23, 1
      %p134 = por %p132, %p133
      %p135 = scmp.ne.s32.totalorder %s127, %s130
      %p136 = scmp.eq.s32.totalorder %s23, 0
      %p137 = por %p135, %p136
      %p138 = scmp.ne.s32.totalorder %s127, %s130
      %p139 = scmp.eq.s32.totalorder %s28, 1
      %p140 = por %p138, %p139
      %p141 = scmp.ne.s32.totalorder %s130, %s131
      %p142 = scmp.eq.s32.totalorder %s28, 0
      %p143 = por %p141, %p142
      %p144 = scmp.ne.s32.totalorder %s130, %s131
      %p145 = scmp.eq.s32.totalorder %s29, 1
      %p146 = por %p144, %p145
      %p148 = scmp.ne.s32.totalorder %s131, %s147
      %p149 = scmp.eq.s32.totalorder %s29, 0
      %p150 = por %p148, %p149
      %s151 = ssub.s32 %s30, %s42
      %s152 = ssub.s32 %s31, %s38
      %s153 = sor.u32 %s151, %s152
      %p154 = scmp.eq.s32.totalorder %s153, 0
      %s156 = sadd.s32 %s155, 1
      %s157 = scalar_select %p154, %s155, %s156
      %p160 = pneg %p154
      %p161 = scmp.eq.s32.totalorder %s23, 1
      %p162 = por %p160, %p161
      %p163 = scmp.ne.s32.totalorder %s155, %s158
      %p164 = scmp.eq.s32.totalorder %s23, 0
      %p165 = por %p163, %p164
      %p166 = scmp.ne.s32.totalorder %s155, %s158
      %p167 = scmp.eq.s32.totalorder %s28, 1
      %p168 = por %p166, %p167
      %p169 = scmp.ne.s32.totalorder %s158, %s159
      %p170 = scmp.eq.s32.totalorder %s28, 0
      %p171 = por %p169, %p170
      %p172 = scmp.ne.s32.totalorder %s158, %s159
      %p173 = scmp.eq.s32.totalorder %s29, 1
      %p174 = por %p172, %p173
      %p176 = scmp.ne.s32.totalorder %s159, %s175
      %p177 = scmp.eq.s32.totalorder %s29, 0
      %p178 = por %p176, %p177
      %p179 = scmp.le.s32.totalorder 1, %s23
      %p180 = scmp.lt.s32.totalorder %s23, 3
      %p181 = pnand %p179, %p180
      %p182 = pneg %p181
      // Predicated region
      $region9: #{tpu_custom_call.1} parent=5 // pred_check
        _
      $region10: #{tpu_custom_call.1} parent=5 // pred_check_branch
        %184 = sbr.rel (%p181) target = $region12
      $region11: #{tpu_custom_call.1} parent=5 // pred_region
        %s185 = ssub.s32 %s23, 1
      $region12: #{tpu_custom_call.1} parent=5 // pred_fallthru
        _
      %p186 = scmp.lt.s32.totalorder %s23, 2
      // Predicated region
      $region13: #{tpu_custom_call.1} parent=5 // pred_check
        %p187 = pneg %p186
      $region14: #{tpu_custom_call.1} parent=5 // pred_check_branch
        %189 = sbr.rel (%p187) target = $region16
      $region15: #{tpu_custom_call.1} parent=5 // pred_region
        // Predicated region
        $region17: #{tpu_custom_call.1} parent=15 // pred_check
          %p190 = pneg %p57
        $region18: #{tpu_custom_call.1} parent=15 // pred_check_branch
          %192 = sbr.rel (%p190) target = $region20
        $region19: #{tpu_custom_call.1} parent=15 // pred_region
          %s193 = sand.u32 %s47, 1
          %s194 = scalar_lea.sflag [#allocation3], %s193
          %s195 = sand.u32 %s47, 1
          %s196 = smul.addr %s195, 8
          %s197 = scalar_lea.vmem [#allocation2], %s196
          %199 = vsyncadd %s194, 0
          %s200 = sadd.s32 %s31, %s30
          %s201 = smul.addr %s200, 8
          %s202 = scalar_lea.hbm %s0, %s201
          %s204 = sshll.u32 %s202, 4
          %s205 = int_to_ptr.hbm [resolvable:$true] %s204
          %s206 = sshll.u32 %s197, 4
          %s207 = int_to_ptr.vmem [resolvable:$true] %s206
          %209 = dma.hbm_to_vmem [thread:$0]  %s205, 128, %s207, %s194
        $region20: #{tpu_custom_call.1} parent=15 // pred_fallthru
          _
        // Predicated region
        $region21: #{tpu_custom_call.1} parent=15 // pred_check
          %p210 = pneg %p83
        $region22: #{tpu_custom_call.1} parent=15 // pred_check_branch
          %212 = sbr.rel (%p210) target = $region24
        $region23: #{tpu_custom_call.1} parent=15 // pred_region
          %s213 = sand.u32 %s23, 1
          %s214 = scalar_lea.sflag [#allocation6], %s213
          %s215 = sand.u32 %s73, 1
          %s216 = smul.addr %s215, 8
          %s217 = scalar_lea.vmem [#allocation5], %s216
          %219 = vsyncadd %s214, 0
          %s220 = smul.addr %s30, 8
          %s221 = scalar_lea.hbm %s1, %s220
          %s223 = sshll.u32 %s221, 4
          %s224 = int_to_ptr.hbm [resolvable:$true] %s223
          %s225 = sshll.u32 %s217, 4
          %s226 = int_to_ptr.vmem [resolvable:$true] %s225
          %228 = dma.hbm_to_vmem [thread:$0]  %s224, 128, %s226, %s214
        $region24: #{tpu_custom_call.1} parent=15 // pred_fallthru
          _
        // Predicated region
        $region25: #{tpu_custom_call.1} parent=15 // pred_check
          %p229 = pneg %p109
        $region26: #{tpu_custom_call.1} parent=15 // pred_check_branch
          %231 = sbr.rel (%p229) target = $region28
        $region27: #{tpu_custom_call.1} parent=15 // pred_region
          %s232 = sand.u32 %s23, 1
          %s233 = scalar_lea.sflag [#allocation6], %s232
          %s234 = sand.u32 %s99, 1
          %s235 = smul.addr %s234, 8
          %s236 = scalar_lea.vmem [#allocation7], %s235
          %238 = vsyncadd %s233, 0
          %s239 = smul.addr %s30, 8
          %s240 = scalar_lea.hbm %s2, %s239
          %s242 = sshll.u32 %s240, 4
          %s243 = int_to_ptr.hbm [resolvable:$true] %s242
          %s244 = sshll.u32 %s236, 4
          %s245 = int_to_ptr.vmem [resolvable:$true] %s244
          %247 = dma.hbm_to_vmem [thread:$0]  %s243, 128, %s245, %s233
        $region28: #{tpu_custom_call.1} parent=15 // pred_fallthru
          _
      $region16: #{tpu_custom_call.1} parent=5 // pred_fallthru
        _
      %p248 = scmp.le.s32.totalorder 1, %s23
      %p249 = scmp.lt.s32.totalorder %s23, 3
      %p250 = pnand %p248, %p249
      %p251 = pneg %p250
      // Predicated region
      $region29: #{tpu_custom_call.1} parent=5 // pred_check
        _
      $region30: #{tpu_custom_call.1} parent=5 // pred_check_branch
        %253 = sbr.rel (%p250) target = $region32
      $region31: #{tpu_custom_call.1} parent=5 // pred_region
        %s254 = ssub.s32 %s23, 1
        %s255 = sand.u32 %s50, 1
        %s256 = scalar_lea.sflag [#allocation3], %s255
        %s257 = sand.u32 %s50, 1
        %s258 = smul.addr %s257, 8
        %s259 = scalar_lea.vmem [#allocation2], %s258
        // Predicated region
        $region33: #{tpu_custom_call.1} parent=31 // pred_check
          %p260 = pneg %p63
        $region34: #{tpu_custom_call.1} parent=31 // pred_check_branch
          %262 = sbr.rel (%p260) target = $region36
        $region35: #{tpu_custom_call.1} parent=31 // pred_region
          %264 = dma.done %s256, 128
        $region36: #{tpu_custom_call.1} parent=31 // pred_fallthru
          _
        %s265 = sand.u32 %s28, 1
        %s266 = scalar_lea.sflag [#allocation6], %s265
        %s267 = sand.u32 %s76, 1
        %s268 = smul.addr %s267, 8
        %s269 = scalar_lea.vmem [#allocation5], %s268
        // Predicated region
        $region37: #{tpu_custom_call.1} parent=31 // pred_check
          %p270 = pneg %p89
        $region38: #{tpu_custom_call.1} parent=31 // pred_check_branch
          %272 = sbr.rel (%p270) target = $region40
        $region39: #{tpu_custom_call.1} parent=31 // pred_region
          %274 = dma.done %s266, 128
        $region40: #{tpu_custom_call.1} parent=31 // pred_fallthru
          _
        %s275 = sand.u32 %s28, 1
        %s276 = scalar_lea.sflag [#allocation6], %s275
        %s277 = sand.u32 %s102, 1
        %s278 = smul.addr %s277, 8
        %s279 = scalar_lea.vmem [#allocation7], %s278
        // Predicated region
        $region41: #{tpu_custom_call.1} parent=31 // pred_check
          %p280 = pneg %p115
        $region42: #{tpu_custom_call.1} parent=31 // pred_check_branch
          %282 = sbr.rel (%p280) target = $region44
        $region43: #{tpu_custom_call.1} parent=31 // pred_region
          %284 = dma.done %s276, 128
        $region44: #{tpu_custom_call.1} parent=31 // pred_fallthru
          _
        %s285 = sand.u32 %s50, 1
        %s286 = scalar_lea.sflag [#allocation3], %s285
        %s287 = sand.u32 %s50, 1
        %s288 = smul.addr %s287, 8
        %s289 = scalar_lea.vmem [#allocation2], %s288
        %p290 = pneg %p63
        %p291 = pneg %p60
        %s292 = sand.u32 %s28, 1
        %s293 = scalar_lea.sflag [#allocation6], %s292
        %s294 = sand.u32 %s76, 1
        %s295 = smul.addr %s294, 8
        %s296 = scalar_lea.vmem [#allocation5], %s295
        %p297 = pneg %p89
        %p298 = pneg %p86
        %s299 = sand.u32 %s28, 1
        %s300 = scalar_lea.sflag [#allocation6], %s299
        %s301 = sand.u32 %s102, 1
        %s302 = smul.addr %s301, 8
        %s303 = scalar_lea.vmem [#allocation7], %s302
        %p304 = pneg %p115
        %p305 = pneg %p112
        %p306 = pneg %p143
        %p307 = pneg %p140
        %s308 = sand.u32 %s130, 1
        %s309 = scalar_lea.sflag [#allocation4], %s308
        %s310 = sand.u32 %s130, 1
        %s311 = smul.addr %s310, 8
        %s312 = scalar_lea.vmem [#allocation8], %s311
        %p313 = pneg %p171
        %p314 = pneg %p168
        %s315 = sand.u32 %s158, 1
        %s316 = scalar_lea.sflag [#allocation10], %s315
        %s317 = sand.u32 %s158, 1
        %s318 = smul.addr %s317, 8
        %s319 = scalar_lea.vmem [#allocation9], %s318
        %v320 = vld [vmem:[%s259] sm:$0xff]
        %v321 = vmul.f32 %v320, 0.17677669
        %v322 = vld [vmem:[%s269] sm:$0xff]
        %v323 = vld [vmem:[%s279] sm:$0xff]
        %vm324 = vcmask 261120
        %v326 = vsel %vm324, %v321, 0
        %v329 = vsel %vm324, %v322, 0
        %331 = vmatpush.xpose.msra.mxu0 0.0
        %332 = vmatpush.xpose.msra.mxu0 0.0
        %333 = vmatpush.xpose.msra.mxu0 0.0
        %334 = vmatpush.xpose.msra.mxu0 0.0
        %335 = vmatpush.xpose.msra.mxu0 0.0
        %336 = vmatpush.xpose.msra.mxu0 0.0
        %337 = vmatpush.xpose.msra.mxu0 0.0
        %338 = vmatpush.xpose.msra.mxu0 0.0
        %339 = vmatpush.xpose.msra.mxu0 0.0
        %340 = vmatpush.xpose.msra.mxu0 0.0
        %341 = vmatpush.xpose.msra.mxu0 0.0
        %342 = vmatpush.xpose.msra.mxu0 0.0
        %343 = vmatpush.xpose.msra.mxu0 0.0
        %344 = vmatpush.xpose.msra.mxu0 0.0
        %345 = vmatpush.xpose.msra.mxu0 0.0
        %346 = vmatpush.xpose.msra.mxu0 %v329
        %347 = vmatmul.f32.gmra.mxu0 %v326
        %v348 = vpop.f32.mrf.mxu0
        %v349 = vadd.f32 0.0, %v348
        %350 = vdwg.mxu0
        %vm351 = vcmask 64512
        %v352 = vsel %vm351, %v349, -inf
        %353 = vmax.xlane.f32.xlu0 %v352
        %v354 = vpop.xlane.xlu0 %353
        %v355 = vsub.f32 %v349, %v354
        %v356 = vmul.f32 %v355, 1.442695
        %v357 = vpow.pop %v356
        %v358 = vsel %vm351, %v357, 0.0
        %359 = vadd.xlane.f32.xlu0 %v358
        %v360 = vpop.xlane.xlu0 %359
        %v361 = vrcp.pop %v360
        %v362 = vmul.f32 %v360, %v361
        %v363 = vsub.f32 1.0, %v362
        %v364 = vmul.f32 %v361, %v363
        %v365 = vadd.f32 %v361, %v364
        %vm366 = vweird.f32 %v360
        %vm367 = vweird.f32 %v361
        %vm368 = vmor %vm366, %vm367
        %v369 = vsel %vm368, %v361, %v365
        %v370 = vand.u32 2147483647, %v360
        %vm371 = vcmp.eq.f32.partialorder %v370, 8.507059e+37
        %v372 = vand.u32 %v360, 2147483648
        %v373 = vor.u32 1.1754944e-38, %v372
        %v374 = vsel %vm371, %v373, %v369
        %v375 = vmul.f32 1.0, %v374
        %v376 = vmul.f32 %v357, %v375
        %v377 = vsel %vm351, %v376, -inf
        %378 = vmax.xlane.f32.xlu0 %v377
        %v379 = vpop.xlane.xlu0 %378
        %vm380 = vcmp.eq.f32.partialorder %v376, %v379
        %v381 = vsel %vm380, -1.0, %v376
        %v382 = vsel %vm351, %v381, -inf
        %383 = vmax.xlane.f32.xlu0 %v382
        %v384 = vpop.xlane.xlu0 %383
        %vm385 = vcmp.eq.f32.partialorder %v381, %v384
        %v386 = vsel %vm385, -1.0, %v381
        %v387 = vsel %vm351, %v386, -inf
        %388 = vmax.xlane.f32.xlu0 %v387
        %v389 = vpop.xlane.xlu0 %388
        %vm390 = vcmp.eq.f32.partialorder %v386, %v389
        %v391 = vsel %vm390, -1.0, %v386
        %v392 = vsel %vm351, %v391, -inf
        %393 = vmax.xlane.f32.xlu0 %v392
        %v394 = vpop.xlane.xlu0 %393
        %v395 = vadd.f32 %v394, 1e-07
        %v396 = vsub.f32 %v376, %v395
        %v397 = vmax.f32 %v396, 0.0
        %v398 = vsel %vm351, %v397, 0.0
        %399 = vadd.xlane.f32.xlu0 %v398
        %v400 = vpop.xlane.xlu0 %399
        %v401 = vadd.f32 %v400, 1e-07
        %v402 = vrcp.pop %v401
        %v403 = vmul.f32 %v401, %v402
        %v404 = vsub.f32 1.0, %v403
        %v405 = vmul.f32 %v402, %v404
        %v406 = vadd.f32 %v402, %v405
        %vm407 = vweird.f32 %v401
        %vm408 = vweird.f32 %v402
        %vm409 = vmor %vm407, %vm408
        %v410 = vsel %vm409, %v402, %v406
        %v411 = vand.u32 2147483647, %v401
        %vm412 = vcmp.eq.f32.partialorder %v411, 8.507059e+37
        %v413 = vand.u32 %v401, 2147483648
        %v414 = vor.u32 1.1754944e-38, %v413
        %v415 = vsel %vm412, %v414, %v410
        %v416 = vmul.f32 1.0, %v415
        %v417 = vmul.f32 %v397, %v416
        %v419 = vsel %vm351, %v417, 0
        %421 = vmatpush.msra.mxu0 0.0
        %422 = vmatpush.msra.mxu0 0.0
        %423 = vmatpush.msra.mxu0 0.0
        %424 = vmatpush.msra.mxu0 0.0
        %425 = vmatpush.msra.mxu0 0.0
        %426 = vmatpush.msra.mxu0 0.0
        %427 = vmatpush.msra.mxu0 0.0
        %428 = vmatpush.msra.mxu0 0.0
        %429 = vmatpush.msra.mxu0 0.0
        %430 = vmatpush.msra.mxu0 0.0
        %431 = vmatpush.msra.mxu0 0.0
        %432 = vmatpush.msra.mxu0 0.0
        %433 = vmatpush.msra.mxu0 0.0
        %434 = vmatpush.msra.mxu0 0.0
        %435 = vmatpush.msra.mxu0 0.0
        %436 = vmatpush.msra.mxu0 %v323
        %437 = vmatmul.f32.gmra.mxu0 %v419
        %v438 = vpop.f32.mrf.mxu0
        %v439 = vadd.f32 0.0, %v438
        %440 = vdwg.mxu0
        %441 = vst.msk [vmem:[%s312] sm:$0xff] %vm324, %v439
        %442 = vst.msk [vmem:[%s319] sm:$0xff] %vm351, %v417
        %s443 = sand.u32 %s130, 1
        %s444 = scalar_lea.sflag [#allocation4], %s443
        %s445 = sand.u32 %s130, 1
        %s446 = smul.addr %s445, 8
        %s447 = scalar_lea.vmem [#allocation8], %s446
        %s448 = sand.u32 %s158, 1
        %s449 = scalar_lea.sflag [#allocation10], %s448
        %s450 = sand.u32 %s158, 1
        %s451 = smul.addr %s450, 8
        %s452 = scalar_lea.vmem [#allocation9], %s451
        // Predicated region
        $region45: #{tpu_custom_call.1} parent=31 // pred_check
          %p453 = pneg %p140
        $region46: #{tpu_custom_call.1} parent=31 // pred_check_branch
          %455 = sbr.rel (%p453) target = $region48
        $region47: #{tpu_custom_call.1} parent=31 // pred_region
          %457 = vsyncadd %s444, 0
          %s458 = sadd.s32 %s33, %s32
          %s459 = smul.addr %s458, 8
          %s460 = scalar_lea.hbm %s3, %s459
          %s462 = sshll.u32 %s447, 4
          %s463 = int_to_ptr.vmem [resolvable:$true] %s462
          %s464 = sshll.u32 %s460, 4
          %s465 = int_to_ptr.hbm [resolvable:$true] %s464
          %467 = dma.vmem_to_hbm [thread:$0]  %s463, 128, %s465, %s444
        $region48: #{tpu_custom_call.1} parent=31 // pred_fallthru
          _
        // Predicated region
        $region49: #{tpu_custom_call.1} parent=31 // pred_check
          %p468 = pneg %p168
        $region50: #{tpu_custom_call.1} parent=31 // pred_check_branch
          %470 = sbr.rel (%p468) target = $region52
        $region51: #{tpu_custom_call.1} parent=31 // pred_region
          %472 = vsyncadd %s449, 0
          %s473 = sadd.s32 %s33, %s32
          %s474 = smul.addr %s473, 8
          %s475 = scalar_lea.hbm %s4, %s474
          %s477 = sshll.u32 %s452, 4
          %s478 = int_to_ptr.vmem [resolvable:$true] %s477
          %s479 = sshll.u32 %s475, 4
          %s480 = int_to_ptr.hbm [resolvable:$true] %s479
          %482 = dma.vmem_to_hbm [thread:$0]  %s478, 128, %s480, %s449
        $region52: #{tpu_custom_call.1} parent=31 // pred_fallthru
          _
      $region32: #{tpu_custom_call.1} parent=5 // pred_fallthru
        _
      %p483 = scmp.le.s32.totalorder 2, %s23
      // Predicated region
      $region53: #{tpu_custom_call.1} parent=5 // pred_check
        %p484 = pneg %p483
      $region54: #{tpu_custom_call.1} parent=5 // pred_check_branch
        %486 = sbr.rel (%p484) target = $region56
      $region55: #{tpu_custom_call.1} parent=5 // pred_region
        %s487 = ssub.s32 %s23, 2
        // Predicated region
        $region57: #{tpu_custom_call.1} parent=55 // pred_check
          %p488 = pneg %p146
        $region58: #{tpu_custom_call.1} parent=55 // pred_check_branch
          %490 = sbr.rel (%p488) target = $region60
        $region59: #{tpu_custom_call.1} parent=55 // pred_region
          %s491 = sand.u32 %s131, 1
          %s492 = scalar_lea.sflag [#allocation4], %s491
          %s493 = sand.u32 %s131, 1
          %s494 = smul.addr %s493, 8
          %s495 = scalar_lea.vmem [#allocation8], %s494
          %497 = dma.done %s492, 128
        $region60: #{tpu_custom_call.1} parent=55 // pred_fallthru
          _
        // Predicated region
        $region61: #{tpu_custom_call.1} parent=55 // pred_check
          %p498 = pneg %p174
        $region62: #{tpu_custom_call.1} parent=55 // pred_check_branch
          %500 = sbr.rel (%p498) target = $region64
        $region63: #{tpu_custom_call.1} parent=55 // pred_region
          %s501 = sand.u32 %s159, 1
          %s502 = scalar_lea.sflag [#allocation10], %s501
          %s503 = sand.u32 %s159, 1
          %s504 = smul.addr %s503, 8
          %s505 = scalar_lea.vmem [#allocation9], %s504
          %507 = dma.done %s502, 128
        $region64: #{tpu_custom_call.1} parent=55 // pred_fallthru
          _
      $region56: #{tpu_custom_call.1} parent=5 // pred_fallthru
        _
    $region6: #{tpu_custom_call.1} parent=1 // loop_footer
      %s27 = sadd.s32 1, %s23
    $region7: #{tpu_custom_call.1} parent=1 // loop_footer_branch
      %22 = sbr.rel target = $region3
    $region8: #{tpu_custom_call.1} parent=1 // loop_exit
      _
    %508 = vsyncpa [#allocation3], 1
    %s509 = scalar_lea.sflag [#allocation3], 1
    %510 = vsyncpa %s509, 1
    %511 = vsyncpa [#allocation6], 1
    %s512 = scalar_lea.sflag [#allocation6], 1
    %513 = vsyncpa %s512, 1
    %514 = vsyncpa [#allocation4], 1
    %s515 = scalar_lea.sflag [#allocation4], 1
    %516 = vsyncpa %s515, 1
    %517 = vsyncpa [#allocation10], 1
    %s518 = scalar_lea.sflag [#allocation10], 1
    %519 = vsyncpa %s518, 1

</llo_original>
